<compile_context>
chip_gen: v7x
topology: tpu7x:2x2x1
jax: 0.10.0
libtpu: 0.0.40
codegen_flags: <defaults>
</compile_context>

<pallas_src>
import jax
import jax.numpy as jnp
from jax.experimental import pallas as pl
from jax.experimental.pallas import tpu as pltpu

_LANE = 128


def fold_dlinear_weights(w_seasonal, b_seasonal, w_trend, b_trend,
                         *, seq_len, kernel_size):
    """Fold pad + moving-average + decomposition + both Linears + bias into one
    augmented weight of shape (P, L+1); the last column is the bias and
    multiplies a constant ones-row appended to the input."""
    # Replicate padding of (k-1)//2 reproduces AvgPool1d(stride=1) output
    # length L only for odd kernel_size (same caveat as the PyTorch module).
    assert kernel_size % 2 == 1, "kernel_size must be odd"
    pad = (kernel_size - 1) // 2
    L = seq_len
    # A[t, s] = (1/k) * #{ j in [0, k) : clip(t - pad + j, 0, L-1) == s }
    t_idx = jnp.arange(L)[:, None, None]              # (L, 1, 1)
    j_idx = jnp.arange(kernel_size)[None, :, None]    # (1, k, 1)
    s_idx = jnp.arange(L)[None, None, :]              # (1, 1, L)
    src = jnp.clip(t_idx - pad + j_idx, 0, L - 1)     # (L, k, 1)
    A = (src == s_idx).astype(jnp.float32).sum(axis=1) / float(kernel_size)  # (L,L)
    # out = Ws (I - A) x + Wt A x + (bs + bt) = (Ws + (Wt - Ws) A) x + b_total
    w_total = (w_seasonal + (w_trend - w_seasonal) @ A).astype(jnp.float32)  # (P,L)
    b_total = (b_seasonal + b_trend).astype(jnp.float32)                      # (P,)
    w_aug = jnp.concatenate([w_total, b_total[:, None]], axis=1)              # (P,L+1)
    return w_aug


def dlinear_kernel(x_ref, w_ref, out_ref):
    # x_ref:   (L+1, TN)  lane-dense input slab (last row is all ones -> bias)
    # w_ref:   (P, L+1)   folded weight+bias, grid-invariant
    # out_ref: (P, TN)    lane-dense output slab (full-lane, unmasked stores)
    y = jnp.dot(w_ref[...], x_ref[...], preferred_element_type=jnp.float32)
    out_ref[...] = jnp.abs(y).astype(out_ref.dtype)


def _pick_lane_tile(n_padded, rows_in, rows_out, *, target=1024,
                    vmem_budget=24 << 20):
    """Lane-tile TN: multiple of 128, as large as possible up to `target`,
    clamped so double-buffered x/out blocks + weight fit the VMEM budget
    (24 MiB leaves headroom under v7x's 32 MiB scoped default)."""
    tn = min(target, n_padded)
    tn = max(_LANE, (tn // _LANE) * _LANE)

    def bytes_needed(t):
        # 2x (x block) + 2x (out block) + 2x weight, all f32
        return 4 * (2 * rows_in * t + 2 * rows_out * t + 2 * rows_in * rows_out)

    while tn > _LANE and bytes_needed(tn) > vmem_budget:
        tn -= _LANE
    return tn


def dlinear_forward(x, w_seasonal, b_seasonal, w_trend, b_trend,
                    *, kernel_size=5):
    """x: (B, L, C) float32 (torch layout).  Returns (B, pred_len, C)."""
    B, L, C = x.shape
    P = w_seasonal.shape[0]                 # torch weight is (pred_len, seq_len)

    w_aug = fold_dlinear_weights(
        w_seasonal, b_seasonal, w_trend, b_trend,
        seq_len=L, kernel_size=kernel_size)                     # (P, L+1)

    # ---- lane-dense layout plumbing (wrapper-side, never in-kernel) ----
    N = B * C
    x2 = jnp.transpose(x, (1, 0, 2)).reshape(L, N)              # (L, B*C)
    n128 = pl.cdiv(N, _LANE) * _LANE
    TN = _pick_lane_tile(n128, L + 1, P)
    Np = pl.cdiv(N, TN) * TN
    x2 = jnp.pad(x2, ((0, 0), (0, Np - N)))                     # zero-pad lanes
    x_aug = jnp.concatenate(
        [x2, jnp.ones((1, Np), x2.dtype)], axis=0)              # (L+1, Np)

    out2d = pl.pallas_call(
        dlinear_kernel,
        out_shape=jax.ShapeDtypeStruct((P, Np), x.dtype),
        grid=(Np // TN,),
        in_specs=[
            pl.BlockSpec((L + 1, TN), lambda j: (0, j)),        # lane-dense x
            pl.BlockSpec((P, L + 1), lambda j: (0, 0)),         # invariant W_aug
        ],
        out_specs=pl.BlockSpec((P, TN), lambda j: (0, j)),
        compiler_params=pltpu.CompilerParams(
            dimension_semantics=("parallel",)),                 # megacore over lanes
    )(x_aug, w_aug)

    # Back to torch layout (B, P, C); lane columns are (b, c)-major/minor.
    return out2d[:, :N].reshape(P, B, C).transpose(1, 0, 2)


dlinear_forward_jit = jax.jit(dlinear_forward, static_argnames=("kernel_size",))


def dlinear_reference(x, w_seasonal, b_seasonal, w_trend, b_trend,
                      *, kernel_size=5):
    """Pure-JAX reference mirroring the PyTorch forward, for verification."""
    pad = (kernel_size - 1) // 2
    front = jnp.repeat(x[:, :1, :], pad, axis=1)
    end = jnp.repeat(x[:, -1:, :], pad, axis=1)
    xp = jnp.concatenate([front, x, end], axis=1)          # (B, L+2p, C)
    L = x.shape[1]
    trend = jnp.stack([xp[:, i:i + L, :] for i in range(kernel_size)],
                      axis=0).mean(axis=0)                 # (B, L, C)
    seasonal = x - trend
    s = jnp.einsum('blc,pl->bpc', seasonal, w_seasonal) + b_seasonal[None, :, None]
    t = jnp.einsum('blc,pl->bpc', trend, w_trend) + b_trend[None, :, None]
    return jnp.abs(s + t)


if __name__ == "__main__":
    # Small shapes consistent with the module: x is (batch, seq_len, channels).
    batch, seq_len, channels, pred_len = 2, 8, 4, 8
    kernel_size = 5

    key = jax.random.PRNGKey(0)
    kx, kws, kbs, kwt, kbt = jax.random.split(key, 5)
    x = jax.random.normal(kx, (batch, seq_len, channels), dtype=jnp.float32)

    # (1) Module-faithful parameters, exactly as DlinearModel.initialize_weights.
    weight_init = 1.0 / seq_len
    w_seasonal = jnp.full((pred_len, seq_len), weight_init, dtype=jnp.float32)
    b_seasonal = jnp.zeros((pred_len,), dtype=jnp.float32)
    w_trend = jnp.full((pred_len, seq_len), weight_init, dtype=jnp.float32)
    b_trend = jnp.zeros((pred_len,), dtype=jnp.float32)

    out = dlinear_forward_jit(x, w_seasonal, b_seasonal, w_trend, b_trend,
                              kernel_size=kernel_size)
    out = jax.block_until_ready(out)
    ref = dlinear_reference(x, w_seasonal, b_seasonal, w_trend, b_trend,
                            kernel_size=kernel_size)
    assert out.shape == (batch, pred_len, channels)
    assert jnp.allclose(out, ref, atol=1e-5, rtol=1e-5)

    # (2) Random weights so the moving-average fold (A_ma) and bias column are
    #     actually exercised (with Ws == Wt the trend term cancels algebraically).
    w_s2 = 0.1 * jax.random.normal(kws, (pred_len, seq_len), dtype=jnp.float32)
    b_s2 = 0.1 * jax.random.normal(kbs, (pred_len,), dtype=jnp.float32)
    w_t2 = 0.1 * jax.random.normal(kwt, (pred_len, seq_len), dtype=jnp.float32)
    b_t2 = 0.1 * jax.random.normal(kbt, (pred_len,), dtype=jnp.float32)

    out2 = dlinear_forward_jit(x, w_s2, b_s2, w_t2, b_t2, kernel_size=kernel_size)
    out2 = jax.block_until_ready(out2)
    ref2 = dlinear_reference(x, w_s2, b_s2, w_t2, b_t2, kernel_size=kernel_size)
    assert jnp.allclose(out2, ref2, atol=1e-5, rtol=1e-5)

    print("KERNEL_OK")
</pallas_src>

<mosaic_0001>
module attributes {stable_mosaic.version = 11 : i64} {
  func.func @dlinear_kernel(%arg0: i32, %arg1: memref<9x128xf32, #tpu.memory_space<vmem>>, %arg2: memref<8x9xf32, #tpu.memory_space<vmem>>, %arg3: memref<8x128xf32, #tpu.memory_space<vmem>>) attributes {dimension_semantics = [#tpu.dimension_semantics<parallel>], iteration_bounds = array<i64: 1>, scalar_prefetch = 0 : i64, scratch_operands = 0 : i64, tpu.core_type = #tpu.core_type<tc>, window_params = [{transform_indices = @transform_0, window_bounds = array<i64: 9, 128>}, {pipeline_mode = #tpu.pipeline_mode<synchronous>, transform_indices = @transform_1, window_bounds = array<i64: 8, 9>}, {transform_indices = @transform_2, window_bounds = array<i64: 8, 128>}]} {
    %c0 = arith.constant 0 : index
    %c0_0 = arith.constant 0 : index
    %0 = vector.load %arg2[%c0, %c0_0] : memref<8x9xf32, #tpu.memory_space<vmem>>, vector<8x9xf32>
    %c0_1 = arith.constant 0 : index
    %c0_2 = arith.constant 0 : index
    %1 = vector.load %arg1[%c0_1, %c0_2] : memref<9x128xf32, #tpu.memory_space<vmem>>, vector<9x128xf32>
    %cst = arith.constant dense<0.000000e+00> : vector<8x128xf32>
    %2 = tpu.matmul %0, %1, %cst {dimension_numbers = #tpu.dot_dimension_numbers<[1], [0], [0], [1], [0, 0, 1, 1], [], []>} : vector<8x9xf32>, vector<9x128xf32>, vector<8x128xf32> -> vector<8x128xf32>
    %3 = math.absf %2 : vector<8x128xf32>
    %c0_3 = arith.constant 0 : index
    %c0_4 = arith.constant 0 : index
    %4 = vector.load %arg3[%c0_3, %c0_4] : memref<8x128xf32, #tpu.memory_space<vmem>>, vector<8x128xf32>
    tpu.vector_store %arg3[%c0_3, %c0_4], %3 {strides = array<i32>} : memref<8x128xf32, #tpu.memory_space<vmem>>, vector<8x128xf32>,
    return
  }
  func.func @transform_0(%arg0: i32) -> (i32, i32) {
    %c0_i32 = arith.constant 0 : i32
    %c0_i32_0 = arith.constant 0 : i32
    return %c0_i32, %arg0 : i32, i32
  }
  func.func @transform_1(%arg0: i32) -> (i32, i32) {
    %c0_i32 = arith.constant 0 : i32
    %c0_i32_0 = arith.constant 0 : i32
    %c0_i32_1 = arith.constant 0 : i32
    return %c0_i32, %c0_i32_0 : i32, i32
  }
  func.func @transform_2(%arg0: i32) -> (i32, i32) {
    %c0_i32 = arith.constant 0 : i32
    %c0_i32_0 = arith.constant 0 : i32
    return %c0_i32, %arg0 : i32, i32
  }
}

</mosaic_0001>

<llo_original>
// kernel: dlinear_forward.1
$region0: #{dlinear_forward.1}
  #allocation0 [shape = 'u32[]', space=smem, size = 0x4, offset = 0x4, fixed_abs, tag = 'smem constant byte address 0x4 - core index']
  #allocation1 [shape = 'u32[144,128]{1,0:T(1,128)}', space=vmem, size = 0x12000, scoped, tag = 'internal scratch']
  %s0 = inlined_call_operand.vmem [shape: f32[9,128], index: 0, kind: input, shape index: {}]
  %s1 = inlined_call_operand.vmem [shape: f32[8,9], index: 1, kind: input, shape index: {}]
  %s2 = inlined_call_operand.vmem [shape: f32[8,128], index: 2, kind: output, shape index: {}]
  %s3 = sld [smem:[#allocation0]]
  $region18: #{dlinear_forward.1} parent=0
    _
  %s5 = ssub.s32 1, %s3
  %s6 = scalar_select 0, %s5, %s3
  // Predicated region
  $region2: #{dlinear_forward.1} parent=0 // pred_check
    _
  $region3: #{dlinear_forward.1} parent=0 // pred_check_branch
    %8 = sbr.rel (0) target = $region5
  $region4: #{dlinear_forward.1} parent=0 // pred_region
    _
  $region5: #{dlinear_forward.1} parent=0 // pred_fallthru
    _
  // Predicated region
  $region6: #{dlinear_forward.1} parent=0 // pred_check
    _
  $region7: #{dlinear_forward.1} parent=0 // pred_check_branch
    %10 = sbr.rel (0) target = $region9
  $region8: #{dlinear_forward.1} parent=0 // pred_region
    _
  $region9: #{dlinear_forward.1} parent=0 // pred_fallthru
    _
  %v11 = vld [vmem:[%s1] sm:$0xff]
  %v12 = vld [vmem:[%s0] sm:$0xff]
  %v13 = vld [vmem:[%s0 + $0x8] sm:$0x1]
  %vm14 = vcmask 72704
  %v16 = vsel %vm14, %v11, 0
  %vm18 = vcmask 1040384
  %v20 = vsel %vm18, %v13, 0
  %22 = vmatprep.subr.mxu0 0.0
  %23 = vmatpush1.msra.mxu0 %v12
  %24 = vmatprep.subr.mxu0 0.0
  %25 = vmatpush1.msra.mxu0 %v20
  %26 = vmatprep.subr.mxu0 0.0
  %27 = vmatpush1.msra.mxu0 0.0
  %28 = vmatprep.subr.mxu0 0.0
  %29 = vmatpush1.msra.mxu0 0.0
  %30 = vmatprep.subr.mxu0 0.0
  %31 = vmatpush1.msra.mxu0 0.0
  %32 = vmatprep.subr.mxu0 0.0
  %33 = vmatpush1.msra.mxu0 0.0
  %34 = vmatprep.subr.mxu0 0.0
  %35 = vmatpush1.msra.mxu0 0.0
  %36 = vmatprep.subr.mxu0 0.0
  %37 = vmatpush1.msra.mxu0 0.0
  %38 = vmatprep.subr.mxu0 0.0
  %39 = vmatpush1.msra.mxu0 0.0
  %40 = vmatprep.subr.mxu0 0.0
  %41 = vmatpush1.msra.mxu0 0.0
  %42 = vmatprep.subr.mxu0 0.0
  %43 = vmatpush1.msra.mxu0 0.0
  %44 = vmatprep.subr.mxu0 0.0
  %45 = vmatpush1.msra.mxu0 0.0
  %46 = vmatprep.subr.mxu0 0.0
  %47 = vmatpush1.msra.mxu0 0.0
  %48 = vmatprep.subr.mxu0 0.0
  %49 = vmatpush1.msra.mxu0 0.0
  %50 = vmatprep.subr.mxu0 0.0
  %51 = vmatpush1.msra.mxu0 0.0
  %52 = vmatprep.subr.mxu0 0.0
  %53 = vmatpush1.msra.mxu0 0.0
  %54 = vmatprep.subr.mxu0 0.0
  %55 = vmatpush1.msra.mxu0 0.0
  %56 = vmatprep.subr.mxu0 0.0
  %57 = vmatpush1.msra.mxu0 0.0
  %58 = vmatprep.subr.mxu0 0.0
  %59 = vmatpush1.msra.mxu0 0.0
  %60 = vmatprep.subr.mxu0 0.0
  %61 = vmatpush1.msra.mxu0 0.0
  %62 = vmatprep.subr.mxu0 0.0
  %63 = vmatpush1.msra.mxu0 0.0
  %64 = vmatprep.subr.mxu0 0.0
  %65 = vmatpush1.msra.mxu0 0.0
  %66 = vmatprep.subr.mxu0 0.0
  %67 = vmatpush1.msra.mxu0 0.0
  %68 = vmatprep.subr.mxu0 0.0
  %69 = vmatpush1.msra.mxu0 0.0
  %70 = vmatprep.subr.mxu0 0.0
  %71 = vmatpush1.msra.mxu0 0.0
  %72 = vmatprep.subr.mxu0 0.0
  %73 = vmatpush1.msra.mxu0 0.0
  %74 = vmatprep.subr.mxu0 0.0
  %75 = vmatpush1.msra.mxu0 0.0
  %76 = vmatprep.subr.mxu0 0.0
  %77 = vmatpush1.msra.mxu0 0.0
  %78 = vmatprep.subr.mxu0 0.0
  %79 = vmatpush1.msra.mxu0 0.0
  %80 = vmatprep.subr.mxu0 0.0
  %81 = vmatpush1.msra.mxu0 0.0
  %82 = vmatprep.subr.mxu0 0.0
  %83 = vmatpush1.msra.mxu0 0.0
  %84 = vmatprep.subr.mxu0 0.0
  %85 = vmatpush1.msra.mxu0 0.0
  %86 = vmatprep.mubr.f32.mxu0 0.0
  %87 = vmatmul.mubr.f32.gmra.mrb[0].mxu0 %v16
  %v88 = vpop.f32.mrb[0].mxu0
  %v89 = vadd.f32 0.0, %v88
  %v90 = vpop.f32.mrb[0].mxu0
  %91 = vdwg.mxu0
  %v92 = vand.u32 2147483647, %v89
  %93 = vst [vmem:[%s2] sm:$0xff] %v92
  // Predicated region
  $region10: #{dlinear_forward.1} parent=0 // pred_check
    _
  $region11: #{dlinear_forward.1} parent=0 // pred_check_branch
    %95 = sbr.rel (0) target = $region13
  $region12: #{dlinear_forward.1} parent=0 // pred_region
    _
  $region13: #{dlinear_forward.1} parent=0 // pred_fallthru
    _
  // Predicated region
  $region14: #{dlinear_forward.1} parent=0 // pred_check
    _
  $region15: #{dlinear_forward.1} parent=0 // pred_check_branch
    %97 = sbr.rel (0) target = $region17
  $region16: #{dlinear_forward.1} parent=0 // pred_region
    _
  $region17: #{dlinear_forward.1} parent=0 // pred_fallthru
    _

</llo_original>
